<compile_context>
chip_gen: v5e
topology: v5e:2x2
jax: 0.10.0
libtpu: 0.0.40
codegen_flags: <defaults>
</compile_context>

<pallas_src>
import numpy as np
import jax
import jax.numpy as jnp
from jax.experimental import pallas as pl
from jax.experimental.pallas import tpu as pltpu


def _gaussian_kernel_1d(ksize: int, sigma: float) -> np.ndarray:
    # Matches cv2.getGaussianKernel; handles the cv2 auto-sigma case (sigma<=0).
    if sigma <= 0:
        sigma = 0.3 * ((ksize - 1) * 0.5 - 1) + 0.8
    ax = np.arange(ksize, dtype=np.float64) - (ksize - 1) / 2.0
    k = np.exp(-(ax ** 2) / (2.0 * sigma ** 2))
    return k / k.sum()


def _reflect101(i: int, n: int) -> int:
    # PyTorch F.pad(mode='reflect') / cv2 BORDER_REFLECT_101 index reflection.
    if n == 1:
        return 0
    while i < 0 or i >= n:
        if i < 0:
            i = -i
        if i >= n:
            i = 2 * (n - 1) - i
    return i


def _reflect_band_matrix_T(n: int, taps: np.ndarray) -> np.ndarray:
    """(n, n) matrix M with M[src, dst] = sum_k taps[k]*[reflect101(dst-pad+k)==src],
    so `row @ M` applies the reflect-padded 1D Gaussian along the last axis."""
    K = len(taps)
    pad = (K - 1) // 2
    M = np.zeros((n, n), np.float32)
    for dst in range(n):
        for k in range(K):
            src = _reflect101(dst - pad + k, n)
            M[src, dst] += float(taps[k])
    return M


def gaussian_smooth(x: jax.Array, kernel_size: int, sigma: float,
                    channels_per_block: int = 8) -> jax.Array:
    """x: (N, C, H, W). Same forward semantics as the PyTorch GaussionSmoothLayer
    (dim=2): reflect pad by (K-1)//2, depthwise KxK Gaussian conv, groups=C."""
    N, C, H, W = x.shape
    K = int(kernel_size)
    pad = (K - 1) // 2
    assert pad < H and pad < W, "reflect padding requires pad < spatial dims"

    taps = _gaussian_kernel_1d(K, sigma)
    wv = tuple(float(t) for t in taps)                   # vertical taps -> immediates
    bwT = jnp.asarray(_reflect_band_matrix_T(W, taps))   # (W, W) horizontal-pass matrix

    NC = N * C
    # Largest block of whole channel-images that divides N*C (no partial blocks).
    CB = 1
    for d in range(1, min(int(channels_per_block), NC) + 1):
        if NC % d == 0:
            CB = d
    grid = (NC // CB,)

    xr = x.reshape(NC, H, W)  # leading-dim merge: free

    def kernel(bw_ref, x_ref, o_ref):
        xb = x_ref[...]                                               # (CB, H, W)
        # ---- fused vertical reflect padding (reflect-101) --------------------
        if pad > 0:
            top = [xb[:, pad - i:pad - i + 1, :] for i in range(pad)]      # rows pad..1
            bot = [xb[:, H - 2 - i:H - 1 - i, :] for i in range(pad)]      # rows H-2..H-1-pad
            xpv = jnp.concatenate(top + [xb] + bot, axis=1)                # (CB, H+2*pad, W)
        else:
            xpv = xb
        # ---- vertical 1D pass: K sublane-shifted madds (VPU) -----------------
        acc = wv[0] * xpv[:, 0:H, :].astype(jnp.float32)
        for k in range(1, K):
            acc = acc + wv[k] * xpv[:, k:k + H, :].astype(jnp.float32)
        # ---- horizontal 1D pass: one MXU matmul (reflect folded into bwT) ----
        out = jnp.dot(acc.reshape(CB * H, W), bw_ref[...],
                      preferred_element_type=jnp.float32)                  # (CB*H, W)
        o_ref[...] = out.reshape(CB, H, W).astype(o_ref.dtype)

    out = pl.pallas_call(
        kernel,
        out_shape=jax.ShapeDtypeStruct((NC, H, W), x.dtype),
        grid=grid,
        in_specs=[
            pl.BlockSpec((W, W), lambda i: (0, 0)),          # band matrix, stays resident
            pl.BlockSpec((CB, H, W), lambda i: (i, 0, 0)),   # block of channel images
        ],
        out_specs=pl.BlockSpec((CB, H, W), lambda i: (i, 0, 0)),
        compiler_params=pltpu.CompilerParams(
            dimension_semantics=("parallel",)),
    )(bwT, xr)
    return out.reshape(N, C, H, W)


def _reference(x, kernel_size, sigma):
    # Pure-JAX depthwise conv reference (correctness check only).
    N, C, H, W = x.shape
    K = int(kernel_size)
    pad = (K - 1) // 2
    k1 = _gaussian_kernel_1d(K, sigma)
    k2 = jnp.asarray((k1[:, None] * k1[None, :]).astype(np.float32))
    xp = jnp.pad(x, ((0, 0), (0, 0), (pad, pad), (pad, pad)), mode="reflect")
    w = jnp.broadcast_to(k2, (C, 1, K, K))  # (C_out, C_in/groups, K, K)
    return jax.lax.conv_general_dilated(
        xp, w, window_strides=(1, 1), padding="VALID",
        dimension_numbers=("NCHW", "OIHW", "NCHW"), feature_group_count=C)


if __name__ == "__main__":
    channel, kernel_size, sigma = 4, 5, 1.5
    N, H, W = 2, 16, 16

    key = jax.random.PRNGKey(0)
    x = jax.random.normal(key, (N, channel, H, W), dtype=jnp.float32)

    # channels_per_block=4 -> grid=(2,) so the "parallel" grid axis has extent >= 2.
    out = gaussian_smooth(x, kernel_size, sigma, channels_per_block=4)
    out = jax.block_until_ready(out)

    ref = jax.block_until_ready(_reference(x, kernel_size, sigma))
    assert out.shape == (N, channel, H, W)
    np.testing.assert_allclose(np.asarray(out), np.asarray(ref), rtol=1e-5, atol=1e-5)

    print("KERNEL_OK")
</pallas_src>

<mosaic_0001>
module attributes {stable_mosaic.version = 11 : i64} {
  func.func @kernel(%arg0: i32, %arg1: memref<16x16xf32, #tpu.memory_space<vmem>>, %arg2: memref<4x16x16xf32, #tpu.memory_space<vmem>>, %arg3: memref<4x16x16xf32, #tpu.memory_space<vmem>>) attributes {dimension_semantics = [#tpu.dimension_semantics<parallel>], iteration_bounds = array<i64: 2>, scalar_prefetch = 0 : i64, scratch_operands = 0 : i64, tpu.core_type = #tpu.core_type<tc>, window_params = [{pipeline_mode = #tpu.pipeline_mode<synchronous>, transform_indices = @transform_0, window_bounds = array<i64: 16, 16>}, {transform_indices = @transform_1, window_bounds = array<i64: 4, 16, 16>}, {transform_indices = @transform_2, window_bounds = array<i64: 4, 16, 16>}]} {
    %c0 = arith.constant 0 : index
    %c0_0 = arith.constant 0 : index
    %c0_1 = arith.constant 0 : index
    %0 = vector.load %arg2[%c0, %c0_0, %c0_1] : memref<4x16x16xf32, #tpu.memory_space<vmem>>, vector<4x16x16xf32>
    %1 = vector.extract_strided_slice %0 {offsets = [0, 2, 0], sizes = [4, 1, 16], strides = [1, 1, 1]} : vector<4x16x16xf32> to vector<4x1x16xf32>
    %2 = vector.extract_strided_slice %0 {offsets = [0, 1, 0], sizes = [4, 1, 16], strides = [1, 1, 1]} : vector<4x16x16xf32> to vector<4x1x16xf32>
    %3 = vector.extract_strided_slice %0 {offsets = [0, 14, 0], sizes = [4, 1, 16], strides = [1, 1, 1]} : vector<4x16x16xf32> to vector<4x1x16xf32>
    %4 = vector.extract_strided_slice %0 {offsets = [0, 13, 0], sizes = [4, 1, 16], strides = [1, 1, 1]} : vector<4x16x16xf32> to vector<4x1x16xf32>
    %5 = tpu.concatenate %1, %2, %0, %3, %4 in 1 : vector<4x1x16xf32>, vector<4x1x16xf32>, vector<4x16x16xf32>, vector<4x1x16xf32>, vector<4x1x16xf32> -> vector<4x20x16xf32>
    %6 = vector.extract_strided_slice %5 {offsets = [0, 0, 0], sizes = [4, 16, 16], strides = [1, 1, 1]} : vector<4x20x16xf32> to vector<4x16x16xf32>
    %cst = arith.constant 0.120078385 : f32
    %7 = vector.broadcast %cst : f32 to vector<4x16x16xf32>
    %8 = arith.mulf %7, %6 : vector<4x16x16xf32>
    %9 = vector.extract_strided_slice %5 {offsets = [0, 1, 0], sizes = [4, 16, 16], strides = [1, 1, 1]} : vector<4x20x16xf32> to vector<4x16x16xf32>
    %cst_2 = arith.constant 0.233880758 : f32
    %10 = vector.broadcast %cst_2 : f32 to vector<4x16x16xf32>
    %11 = arith.mulf %10, %9 : vector<4x16x16xf32>
    %12 = arith.addf %8, %11 : vector<4x16x16xf32>
    %13 = vector.extract_strided_slice %5 {offsets = [0, 2, 0], sizes = [4, 16, 16], strides = [1, 1, 1]} : vector<4x20x16xf32> to vector<4x16x16xf32>
    %cst_3 = arith.constant 0.292081714 : f32
    %14 = vector.broadcast %cst_3 : f32 to vector<4x16x16xf32>
    %15 = arith.mulf %14, %13 : vector<4x16x16xf32>
    %16 = arith.addf %12, %15 : vector<4x16x16xf32>
    %17 = vector.extract_strided_slice %5 {offsets = [0, 3, 0], sizes = [4, 16, 16], strides = [1, 1, 1]} : vector<4x20x16xf32> to vector<4x16x16xf32>
    %cst_4 = arith.constant 0.233880758 : f32
    %18 = vector.broadcast %cst_4 : f32 to vector<4x16x16xf32>
    %19 = arith.mulf %18, %17 : vector<4x16x16xf32>
    %20 = arith.addf %16, %19 : vector<4x16x16xf32>
    %21 = vector.extract_strided_slice %5 {offsets = [0, 4, 0], sizes = [4, 16, 16], strides = [1, 1, 1]} : vector<4x20x16xf32> to vector<4x16x16xf32>
    %cst_5 = arith.constant 0.120078385 : f32
    %22 = vector.broadcast %cst_5 : f32 to vector<4x16x16xf32>
    %23 = arith.mulf %22, %21 : vector<4x16x16xf32>
    %24 = arith.addf %20, %23 : vector<4x16x16xf32>
    %25 = vector.shape_cast %24 : vector<4x16x16xf32> to vector<64x16xf32>
    %c0_6 = arith.constant 0 : index
    %c0_7 = arith.constant 0 : index
    %26 = vector.load %arg1[%c0_6, %c0_7] : memref<16x16xf32, #tpu.memory_space<vmem>>, vector<16x16xf32>
    %cst_8 = arith.constant dense<0.000000e+00> : vector<64x16xf32>
    %27 = tpu.matmul %25, %26, %cst_8 {dimension_numbers = #tpu.dot_dimension_numbers<[1], [0], [0], [1], [0, 0, 1, 1], [], []>} : vector<64x16xf32>, vector<16x16xf32>, vector<64x16xf32> -> vector<64x16xf32>
    %28 = vector.shape_cast %27 : vector<64x16xf32> to vector<4x16x16xf32>
    %c0_9 = arith.constant 0 : index
    %c0_10 = arith.constant 0 : index
    %c0_11 = arith.constant 0 : index
    %29 = vector.load %arg3[%c0_9, %c0_10, %c0_11] : memref<4x16x16xf32, #tpu.memory_space<vmem>>, vector<4x16x16xf32>
    tpu.vector_store %arg3[%c0_9, %c0_10, %c0_11], %28 {strides = array<i32>} : memref<4x16x16xf32, #tpu.memory_space<vmem>>, vector<4x16x16xf32>,
    return
  }
  func.func @transform_0(%arg0: i32) -> (i32, i32) {
    %c0_i32 = arith.constant 0 : i32
    %c0_i32_0 = arith.constant 0 : i32
    %c0_i32_1 = arith.constant 0 : i32
    return %c0_i32, %c0_i32_0 : i32, i32
  }
  func.func @transform_1(%arg0: i32) -> (i32, i32, i32) {
    %c0_i32 = arith.constant 0 : i32
    %c0_i32_0 = arith.constant 0 : i32
    %c0_i32_1 = arith.constant 0 : i32
    return %arg0, %c0_i32, %c0_i32_0 : i32, i32, i32
  }
  func.func @transform_2(%arg0: i32) -> (i32, i32, i32) {
    %c0_i32 = arith.constant 0 : i32
    %c0_i32_0 = arith.constant 0 : i32
    %c0_i32_1 = arith.constant 0 : i32
    return %arg0, %c0_i32, %c0_i32_0 : i32, i32, i32
  }
}

</mosaic_0001>

<llo_original>
// kernel: tpu_custom_call.1
$region0: #{tpu_custom_call.1}
  #allocation0 [shape = 'u32[]', space=smem, size = 0x4, offset = 0x4, fixed_abs, tag = 'smem constant byte address 0x4 - core index']
  #allocation1 [shape = 'u32[72,128]{1,0:T(1,128)}', space=vmem, size = 0x9000, scoped, tag = 'internal scratch']
  %s0 = inlined_call_operand.hbm [shape: f32[16,16], index: 0, kind: input, shape index: {}]
  %s1 = inlined_call_operand.hbm [shape: f32[8,16,16], index: 1, kind: input, shape index: {}]
  %s2 = inlined_call_operand.hbm [shape: f32[8,16,16], index: 2, kind: output, shape index: {}]
  %s3 = sld [smem:[#allocation0]]
  $region49: #{tpu_custom_call.1} parent=0
    _
  %s5 = ssub.s32 1, %s3
  %s6 = scalar_select 0, %s5, %s3
  $region1: #{tpu_custom_call.1} parent=0
    #allocation2 [shape = 'u8[8192]{0}', space=vmem, size = 0x2000, scoped, tag = 'input window, operand 0, single buffered']
    #allocation3 [shape = 's32[2]{0}', space=sflag, size = 0x8, scoped, tag = 'scoped memory for tpu_custom_call.1']
    #allocation4 [shape = 's32[2]{0}', space=sflag, size = 0x8, scoped, tag = 'scoped memory for tpu_custom_call.1']
    #allocation5 [shape = 'u8[65536]{0}', space=vmem, size = 0x10000, scoped, tag = 'input window, operand 1']
    #allocation6 [shape = 's32[2]{0}', space=sflag, size = 0x8, scoped, tag = 'scoped memory for tpu_custom_call.1']
    #allocation7 [shape = 'u8[65536]{0}', space=vmem, size = 0x10000, scoped, tag = 'output window, operand 0']
    %7 = vsyncpa [#allocation3], 0
    %8 = vsyncpa [#allocation6], 0
    %s9 = scalar_lea.sflag [#allocation6], 1
    %10 = vsyncpa %s9, 0
    %11 = vsyncpa [#allocation4], 0
    %s12 = scalar_lea.sflag [#allocation4], 1
    %13 = vsyncpa %s12, 0
    loop: start=0, step=1, limit=4
    $region2: #{tpu_custom_call.1} parent=1 // loop_pre_header
      _
    $region3: #{tpu_custom_call.1} parent=1 // loop_header
      %s15 = sphi 0, %s19
      %p16 = scmp.ge.s32.totalorder %s15, 4
      %s23 = sphi 0, %s23
      %s25 = sphi 0, %s23
      %s26 = sphi 0, %s25
      %s40 = sphi 0, %s26
      %s46 = sphi 0, %s48
      %s49 = sphi 0, %s46
      %s50 = sphi 0, %s49
      %s66 = sphi 0, %s50
      %s72 = sphi 0, %s74
      %s75 = sphi 0, %s72
      %s76 = sphi 0, %s75
      %s92 = sphi 0, %s76
    $region4: #{tpu_custom_call.1} parent=1 // loop_header_branch
      %18 = sbr.rel (%p16) target = $region8
    $region5: #{tpu_custom_call.1} parent=1 // loop_body
      %s20 = ssub.s32 %s15, 1
      %s21 = ssub.s32 %s15, 2
      %s22 = sadd.s32 %s15, 1
      %s24 = sadd.s32 %s23, 1
      %p27 = scmp.eq.s32.totalorder %s15, 1
      %p28 = scmp.ne.s32.totalorder %s23, %s25
      %p29 = scmp.eq.s32.totalorder %s15, 0
      %p30 = por %p28, %p29
      %p31 = scmp.ne.s32.totalorder %s23, %s25
      %p32 = scmp.eq.s32.totalorder %s20, 1
      %p33 = por %p31, %p32
      %p34 = scmp.ne.s32.totalorder %s25, %s26
      %p35 = scmp.eq.s32.totalorder %s20, 0
      %p36 = por %p34, %p35
      %p37 = scmp.ne.s32.totalorder %s25, %s26
      %p38 = scmp.eq.s32.totalorder %s21, 1
      %p39 = por %p37, %p38
      %p41 = scmp.ne.s32.totalorder %s26, %s40
      %p42 = scmp.eq.s32.totalorder %s21, 0
      %p43 = por %p41, %p42
      %s44 = ssub.s32 %s15, %s22
      %p45 = scmp.eq.s32.totalorder %s44, 0
      %s47 = sadd.s32 %s46, 1
      %s48 = scalar_select %p45, %s46, %s47
      %p51 = pneg %p45
      %p52 = scmp.eq.s32.totalorder %s15, 1
      %p53 = por %p51, %p52
      %p54 = scmp.ne.s32.totalorder %s46, %s49
      %p55 = scmp.eq.s32.totalorder %s15, 0
      %p56 = por %p54, %p55
      %p57 = scmp.ne.s32.totalorder %s46, %s49
      %p58 = scmp.eq.s32.totalorder %s20, 1
      %p59 = por %p57, %p58
      %p60 = scmp.ne.s32.totalorder %s49, %s50
      %p61 = scmp.eq.s32.totalorder %s20, 0
      %p62 = por %p60, %p61
      %p63 = scmp.ne.s32.totalorder %s49, %s50
      %p64 = scmp.eq.s32.totalorder %s21, 1
      %p65 = por %p63, %p64
      %p67 = scmp.ne.s32.totalorder %s50, %s66
      %p68 = scmp.eq.s32.totalorder %s21, 0
      %p69 = por %p67, %p68
      %s70 = ssub.s32 %s15, %s22
      %p71 = scmp.eq.s32.totalorder %s70, 0
      %s73 = sadd.s32 %s72, 1
      %s74 = scalar_select %p71, %s72, %s73
      %p77 = pneg %p71
      %p78 = scmp.eq.s32.totalorder %s15, 1
      %p79 = por %p77, %p78
      %p80 = scmp.ne.s32.totalorder %s72, %s75
      %p81 = scmp.eq.s32.totalorder %s15, 0
      %p82 = por %p80, %p81
      %p83 = scmp.ne.s32.totalorder %s72, %s75
      %p84 = scmp.eq.s32.totalorder %s20, 1
      %p85 = por %p83, %p84
      %p86 = scmp.ne.s32.totalorder %s75, %s76
      %p87 = scmp.eq.s32.totalorder %s20, 0
      %p88 = por %p86, %p87
      %p89 = scmp.ne.s32.totalorder %s75, %s76
      %p90 = scmp.eq.s32.totalorder %s21, 1
      %p91 = por %p89, %p90
      %p93 = scmp.ne.s32.totalorder %s76, %s92
      %p94 = scmp.eq.s32.totalorder %s21, 0
      %p95 = por %p93, %p94
      %p96 = scmp.le.s32.totalorder 1, %s15
      %p97 = scmp.lt.s32.totalorder %s15, 3
      %p98 = pnand %p96, %p97
      %p99 = pneg %p98
      // Predicated region
      $region9: #{tpu_custom_call.1} parent=5 // pred_check
        _
      $region10: #{tpu_custom_call.1} parent=5 // pred_check_branch
        %101 = sbr.rel (%p98) target = $region12
      $region11: #{tpu_custom_call.1} parent=5 // pred_region
        %s102 = ssub.s32 %s15, 1
        // Predicated region
        $region13: #{tpu_custom_call.1} parent=11 // pred_check
          %p103 = pneg %p36
        $region14: #{tpu_custom_call.1} parent=11 // pred_check_branch
          %105 = sbr.rel (%p103) target = $region16
        $region15: #{tpu_custom_call.1} parent=11 // pred_region
          %107 = vsyncadd [#allocation3], 0
          %s108 = sshll.u32 %s0, 4
          %s109 = int_to_ptr.hbm [resolvable:$true] %s108
          %s110 = sshll.u32 [#allocation2], 4
          %s111 = int_to_ptr.vmem [resolvable:$true] %s110
          %116 = dma.hbm_to_vmem [thread:$0]  %s109, 256, %s111, [#allocation3], 128, 128, 8
        $region16: #{tpu_custom_call.1} parent=11 // pred_fallthru
          _
      $region12: #{tpu_custom_call.1} parent=5 // pred_fallthru
        _
      %p117 = scmp.lt.s32.totalorder %s15, 2
      // Predicated region
      $region17: #{tpu_custom_call.1} parent=5 // pred_check
        %p118 = pneg %p117
      $region18: #{tpu_custom_call.1} parent=5 // pred_check_branch
        %120 = sbr.rel (%p118) target = $region20
      $region19: #{tpu_custom_call.1} parent=5 // pred_region
        // Predicated region
        $region21: #{tpu_custom_call.1} parent=19 // pred_check
          %p121 = pneg %p56
        $region22: #{tpu_custom_call.1} parent=19 // pred_check_branch
          %123 = sbr.rel (%p121) target = $region24
        $region23: #{tpu_custom_call.1} parent=19 // pred_region
          %s124 = sand.u32 %s46, 1
          %s125 = scalar_lea.sflag [#allocation6], %s124
          %s126 = sand.u32 %s46, 1
          %s127 = smul.addr %s126, 64
          %s128 = scalar_lea.vmem [#allocation5], %s127
          %s129 = smul.u32 4, %s15
          %131 = vsyncadd %s125, 0
          %s132 = smul.addr %s129, 2
          %s133 = smul.addr %s132, 8
          %s134 = scalar_lea.hbm %s1, %s133
          %s135 = sshll.u32 %s134, 4
          %s136 = int_to_ptr.hbm [resolvable:$true] %s135
          %s137 = sshll.u32 %s128, 4
          %s138 = int_to_ptr.vmem [resolvable:$true] %s137
          %143 = dma.hbm_to_vmem [thread:$0]  %s136, 1024, %s138, %s125, 128, 128, 8
        $region24: #{tpu_custom_call.1} parent=19 // pred_fallthru
          _
      $region20: #{tpu_custom_call.1} parent=5 // pred_fallthru
        _
      %p144 = scmp.le.s32.totalorder 1, %s15
      %p145 = scmp.lt.s32.totalorder %s15, 3
      %p146 = pnand %p144, %p145
      %p147 = pneg %p146
      // Predicated region
      $region25: #{tpu_custom_call.1} parent=5 // pred_check
        _
      $region26: #{tpu_custom_call.1} parent=5 // pred_check_branch
        %149 = sbr.rel (%p146) target = $region28
      $region27: #{tpu_custom_call.1} parent=5 // pred_region
        %s150 = ssub.s32 %s15, 1
        // Predicated region
        $region29: #{tpu_custom_call.1} parent=27 // pred_check
          %p151 = pneg %p36
        $region30: #{tpu_custom_call.1} parent=27 // pred_check_branch
          %153 = sbr.rel (%p151) target = $region32
        $region31: #{tpu_custom_call.1} parent=27 // pred_region
          %155 = dma.done [#allocation3], 256
        $region32: #{tpu_custom_call.1} parent=27 // pred_fallthru
          _
        %s156 = sand.u32 %s49, 1
        %s157 = scalar_lea.sflag [#allocation6], %s156
        %s158 = sand.u32 %s49, 1
        %s159 = smul.addr %s158, 64
        %s160 = scalar_lea.vmem [#allocation5], %s159
        // Predicated region
        $region33: #{tpu_custom_call.1} parent=27 // pred_check
          %p161 = pneg %p62
        $region34: #{tpu_custom_call.1} parent=27 // pred_check_branch
          %163 = sbr.rel (%p161) target = $region36
        $region35: #{tpu_custom_call.1} parent=27 // pred_region
          %165 = dma.done %s157, 1024
        $region36: #{tpu_custom_call.1} parent=27 // pred_fallthru
          _
        %p166 = pneg %p36
        %p167 = pneg %p33
        %s168 = sand.u32 %s49, 1
        %s169 = scalar_lea.sflag [#allocation6], %s168
        %s170 = sand.u32 %s49, 1
        %s171 = smul.addr %s170, 64
        %s172 = scalar_lea.vmem [#allocation5], %s171
        %p173 = pneg %p62
        %p174 = pneg %p59
        %p175 = pneg %p88
        %p176 = pneg %p85
        %s177 = sand.u32 %s75, 1
        %s178 = scalar_lea.sflag [#allocation4], %s177
        %s179 = sand.u32 %s75, 1
        %s180 = smul.addr %s179, 64
        %s181 = scalar_lea.vmem [#allocation7], %s180
        %s182 = smul.u32 4, %s20
        %s183 = smul.u32 4, %s20
        %v184 = vld [vmem:[%s160] sm:$0xff]
        %v185 = vld [vmem:[%s160 + $0x8] sm:$0xff]
        %v186 = vld [vmem:[%s160 + $0x10] sm:$0xff]
        %v187 = vld [vmem:[%s160 + $0x18] sm:$0xff]
        %v188 = vld [vmem:[%s160 + $0x20] sm:$0xff]
        %v189 = vld [vmem:[%s160 + $0x28] sm:$0xff]
        %v190 = vld [vmem:[%s160 + $0x30] sm:$0xff]
        %v191 = vld [vmem:[%s160 + $0x38] sm:$0xff]
        %v196 = vrot.slane %v184, 2
        %v197 = vrot.slane %v186, 2
        %v198 = vrot.slane %v188, 2
        %v199 = vrot.slane %v190, 2
        %vm208 = vcmask 1041408
        %v209 = vrot.slane %v184, 6
        %v210 = vrot.slane %v185, 6
        %v211 = vsel %vm208, %v209, %v210
        %v212 = vrot.slane %v186, 6
        %v213 = vrot.slane %v187, 6
        %v214 = vsel %vm208, %v212, %v213
        %v215 = vrot.slane %v188, 6
        %v216 = vrot.slane %v189, 6
        %v217 = vsel %vm208, %v215, %v216
        %v218 = vrot.slane %v190, 6
        %v219 = vrot.slane %v191, 6
        %v220 = vsel %vm208, %v218, %v219
        %v233 = vrot.slane %v185, 4
        %v234 = vrot.slane %v187, 4
        %v235 = vrot.slane %v189, 4
        %v236 = vrot.slane %v191, 4
        %v241 = vrot.slane %v185, 2
        %v242 = vrot.slane %v187, 2
        %v243 = vrot.slane %v189, 2
        %v244 = vrot.slane %v191, 2
        %vm249 = vcmask 1040384
        %v250 = vsel %vm249, %v196, %v184
        %v251 = vsel %vm249, %v197, %v186
        %v252 = vsel %vm249, %v198, %v188
        %v253 = vsel %vm249, %v199, %v190
        %v254 = vsel %vm208, %v250, %v209
        %v255 = vsel %vm208, %v251, %v212
        %v256 = vsel %vm208, %v252, %v215
        %v257 = vsel %vm208, %v253, %v218
        %v258 = vsel %vm208, %v210, %v233
        %v259 = vsel %vm208, %v213, %v234
        %v260 = vsel %vm208, %v216, %v235
        %v261 = vsel %vm208, %v219, %v236
        %vm262 = vcmask 1042432
        %v263 = vsel %vm262, %v258, %v241
        %v264 = vsel %vm262, %v259, %v242
        %v265 = vsel %vm262, %v260, %v243
        %v266 = vsel %vm262, %v261, %v244
        %v267 = vmul.f32 %v254, 0.120078385
        %v268 = vmul.f32 %v211, 0.120078385
        %v269 = vmul.f32 %v255, 0.120078385
        %v270 = vmul.f32 %v214, 0.120078385
        %v271 = vmul.f32 %v256, 0.120078385
        %v272 = vmul.f32 %v217, 0.120078385
        %v273 = vmul.f32 %v257, 0.120078385
        %v274 = vmul.f32 %v220, 0.120078385
        %v275 = vmul.f32 %v254, 0.23388076
        %v276 = vmul.f32 %v211, 0.23388076
        %v277 = vmul.f32 %v263, 0.23388076
        %v278 = vmul.f32 %v255, 0.23388076
        %v279 = vmul.f32 %v214, 0.23388076
        %v280 = vmul.f32 %v264, 0.23388076
        %v281 = vmul.f32 %v256, 0.23388076
        %v282 = vmul.f32 %v217, 0.23388076
        %v283 = vmul.f32 %v265, 0.23388076
        %v284 = vmul.f32 %v257, 0.23388076
        %v285 = vmul.f32 %v220, 0.23388076
        %v286 = vmul.f32 %v266, 0.23388076
        %vm299 = vcmask 1046528
        %v300 = vrot.slane %v275, 1
        %v301 = vrot.slane %v276, 1
        %v302 = vsel %vm299, %v300, %v301
        %v303 = vrot.slane %v277, 1
        %v304 = vsel %vm299, %v301, %v303
        %v305 = vrot.slane %v278, 1
        %v306 = vrot.slane %v279, 1
        %v307 = vsel %vm299, %v305, %v306
        %v308 = vrot.slane %v280, 1
        %v309 = vsel %vm299, %v306, %v308
        %v310 = vrot.slane %v281, 1
        %v311 = vrot.slane %v282, 1
        %v312 = vsel %vm299, %v310, %v311
        %v313 = vrot.slane %v283, 1
        %v314 = vsel %vm299, %v311, %v313
        %v315 = vrot.slane %v284, 1
        %v316 = vrot.slane %v285, 1
        %v317 = vsel %vm299, %v315, %v316
        %v318 = vrot.slane %v286, 1
        %v319 = vsel %vm299, %v316, %v318
        %v328 = vadd.f32 %v267, %v302
        %v329 = vadd.f32 %v268, %v304
        %v330 = vadd.f32 %v269, %v307
        %v331 = vadd.f32 %v270, %v309
        %v332 = vadd.f32 %v271, %v312
        %v333 = vadd.f32 %v272, %v314
        %v334 = vadd.f32 %v273, %v317
        %v335 = vadd.f32 %v274, %v319
        %v336 = vmul.f32 %v254, 0.2920817
        %v337 = vmul.f32 %v211, 0.2920817
        %v338 = vmul.f32 %v263, 0.2920817
        %v339 = vmul.f32 %v255, 0.2920817
        %v340 = vmul.f32 %v214, 0.2920817
        %v341 = vmul.f32 %v264, 0.2920817
        %v342 = vmul.f32 %v256, 0.2920817
        %v343 = vmul.f32 %v217, 0.2920817
        %v344 = vmul.f32 %v265, 0.2920817
        %v345 = vmul.f32 %v257, 0.2920817
        %v346 = vmul.f32 %v220, 0.2920817
        %v347 = vmul.f32 %v266, 0.2920817
        %vm360 = vcmask 1045504
        %v361 = vrot.slane %v336, 2
        %v362 = vrot.slane %v337, 2
        %v363 = vsel %vm360, %v361, %v362
        %v364 = vrot.slane %v338, 2
        %v365 = vsel %vm360, %v362, %v364
        %v366 = vrot.slane %v339, 2
        %v367 = vrot.slane %v340, 2
        %v368 = vsel %vm360, %v366, %v367
        %v369 = vrot.slane %v341, 2
        %v370 = vsel %vm360, %v367, %v369
        %v371 = vrot.slane %v342, 2
        %v372 = vrot.slane %v343, 2
        %v373 = vsel %vm360, %v371, %v372
        %v374 = vrot.slane %v344, 2
        %v375 = vsel %vm360, %v372, %v374
        %v376 = vrot.slane %v345, 2
        %v377 = vrot.slane %v346, 2
        %v378 = vsel %vm360, %v376, %v377
        %v379 = vrot.slane %v347, 2
        %v380 = vsel %vm360, %v377, %v379
        %v389 = vadd.f32 %v328, %v363
        %v390 = vadd.f32 %v329, %v365
        %v391 = vadd.f32 %v330, %v368
        %v392 = vadd.f32 %v331, %v370
        %v393 = vadd.f32 %v332, %v373
        %v394 = vadd.f32 %v333, %v375
        %v395 = vadd.f32 %v334, %v378
        %v396 = vadd.f32 %v335, %v380
        %vm397 = vcmask 1044480
        %v398 = vrot.slane %v275, 3
        %v399 = vrot.slane %v276, 3
        %v400 = vsel %vm397, %v398, %v399
        %v401 = vrot.slane %v277, 3
        %v402 = vsel %vm397, %v399, %v401
        %v403 = vrot.slane %v278, 3
        %v404 = vrot.slane %v279, 3
        %v405 = vsel %vm397, %v403, %v404
        %v406 = vrot.slane %v280, 3
        %v407 = vsel %vm397, %v404, %v406
        %v408 = vrot.slane %v281, 3
        %v409 = vrot.slane %v282, 3
        %v410 = vsel %vm397, %v408, %v409
        %v411 = vrot.slane %v283, 3
        %v412 = vsel %vm397, %v409, %v411
        %v413 = vrot.slane %v284, 3
        %v414 = vrot.slane %v285, 3
        %v415 = vsel %vm397, %v413, %v414
        %v416 = vrot.slane %v286, 3
        %v417 = vsel %vm397, %v414, %v416
        %v426 = vadd.f32 %v389, %v400
        %v427 = vadd.f32 %v390, %v402
        %v428 = vadd.f32 %v391, %v405
        %v429 = vadd.f32 %v392, %v407
        %v430 = vadd.f32 %v393, %v410
        %v431 = vadd.f32 %v394, %v412
        %v432 = vadd.f32 %v395, %v415
        %v433 = vadd.f32 %v396, %v417
        %v434 = vmul.f32 %v263, 0.120078385
        %v435 = vmul.f32 %v264, 0.120078385
        %v436 = vmul.f32 %v265, 0.120078385
        %v437 = vmul.f32 %v266, 0.120078385
        %vm450 = vcmask 1043456
        %v451 = vrot.slane %v267, 4
        %v452 = vrot.slane %v268, 4
        %v453 = vsel %vm450, %v451, %v452
        %v454 = vrot.slane %v434, 4
        %v455 = vsel %vm450, %v452, %v454
        %v456 = vrot.slane %v269, 4
        %v457 = vrot.slane %v270, 4
        %v458 = vsel %vm450, %v456, %v457
        %v459 = vrot.slane %v435, 4
        %v460 = vsel %vm450, %v457, %v459
        %v461 = vrot.slane %v271, 4
        %v462 = vrot.slane %v272, 4
        %v463 = vsel %vm450, %v461, %v462
        %v464 = vrot.slane %v436, 4
        %v465 = vsel %vm450, %v462, %v464
        %v466 = vrot.slane %v273, 4
        %v467 = vrot.slane %v274, 4
        %v468 = vsel %vm450, %v466, %v467
        %v469 = vrot.slane %v437, 4
        %v470 = vsel %vm450, %v467, %v469
        %v479 = vadd.f32 %v426, %v453
        %v480 = vadd.f32 %v427, %v455
        %v481 = vadd.f32 %v428, %v458
        %v482 = vadd.f32 %v429, %v460
        %v483 = vadd.f32 %v430, %v463
        %v484 = vadd.f32 %v431, %v465
        %v485 = vadd.f32 %v432, %v468
        %v486 = vadd.f32 %v433, %v470
        %v487 = vld [vmem:[#allocation2] sm:$0xff]
        %v488 = vld [vmem:[#allocation2 + $0x8] sm:$0xff]
        %vm489 = vcmask 130048
        %v491 = vsel %vm489, %v479, 0
        %v494 = vsel %vm489, %v480, 0
        %v497 = vsel %vm489, %v481, 0
        %v500 = vsel %vm489, %v482, 0
        %v503 = vsel %vm489, %v483, 0
        %v506 = vsel %vm489, %v484, 0
        %v509 = vsel %vm489, %v485, 0
        %v512 = vsel %vm489, %v486, 0
        %514 = vmatpush.msra.mxu0 0.0
        %515 = vmatpush.msra.mxu0 0.0
        %516 = vmatpush.msra.mxu0 0.0
        %517 = vmatpush.msra.mxu0 0.0
        %518 = vmatpush.msra.mxu0 0.0
        %519 = vmatpush.msra.mxu0 0.0
        %520 = vmatpush.msra.mxu0 0.0
        %521 = vmatpush.msra.mxu0 0.0
        %522 = vmatpush.msra.mxu0 0.0
        %523 = vmatpush.msra.mxu0 0.0
        %524 = vmatpush.msra.mxu0 0.0
        %525 = vmatpush.msra.mxu0 0.0
        %526 = vmatpush.msra.mxu0 0.0
        %527 = vmatpush.msra.mxu0 0.0
        %528 = vmatpush.msra.mxu0 %v488
        %529 = vmatpush.msra.mxu0 %v487
        %530 = vmatmul.f32.gmra.mxu0 %v491
        %v531 = vpop.f32.mrf.mxu0
        %v532 = vadd.f32 0.0, %v531
        %533 = vmatmul.f32.gmra.mxu0 %v494
        %v534 = vpop.f32.mrf.mxu0
        %v535 = vadd.f32 0.0, %v534
        %536 = vmatmul.f32.gmra.mxu0 %v497
        %v537 = vpop.f32.mrf.mxu0
        %v538 = vadd.f32 0.0, %v537
        %539 = vmatmul.f32.gmra.mxu0 %v500
        %v540 = vpop.f32.mrf.mxu0
        %v541 = vadd.f32 0.0, %v540
        %542 = vmatmul.f32.gmra.mxu0 %v503
        %v543 = vpop.f32.mrf.mxu0
        %v544 = vadd.f32 0.0, %v543
        %545 = vmatmul.f32.gmra.mxu0 %v506
        %v546 = vpop.f32.mrf.mxu0
        %v547 = vadd.f32 0.0, %v546
        %548 = vmatmul.f32.gmra.mxu0 %v509
        %v549 = vpop.f32.mrf.mxu0
        %v550 = vadd.f32 0.0, %v549
        %551 = vmatmul.f32.gmra.mxu0 %v512
        %v552 = vpop.f32.mrf.mxu0
        %v553 = vadd.f32 0.0, %v552
        %554 = vdwg.mxu0
        %555 = vst.msk [vmem:[%s181] sm:$0xff] %vm489, %v532
        %556 = vst.msk [vmem:[%s181 + $0x8] sm:$0xff] %vm489, %v535
        %557 = vst.msk [vmem:[%s181 + $0x10] sm:$0xff] %vm489, %v538
        %558 = vst.msk [vmem:[%s181 + $0x18] sm:$0xff] %vm489, %v541
        %559 = vst.msk [vmem:[%s181 + $0x20] sm:$0xff] %vm489, %v544
        %560 = vst.msk [vmem:[%s181 + $0x28] sm:$0xff] %vm489, %v547
        %561 = vst.msk [vmem:[%s181 + $0x30] sm:$0xff] %vm489, %v550
        %562 = vst.msk [vmem:[%s181 + $0x38] sm:$0xff] %vm489, %v553
        %s563 = sand.u32 %s75, 1
        %s564 = scalar_lea.sflag [#allocation4], %s563
        %s565 = sand.u32 %s75, 1
        %s566 = smul.addr %s565, 64
        %s567 = scalar_lea.vmem [#allocation7], %s566
        // Predicated region
        $region37: #{tpu_custom_call.1} parent=27 // pred_check
          %p568 = pneg %p85
        $region38: #{tpu_custom_call.1} parent=27 // pred_check_branch
          %570 = sbr.rel (%p568) target = $region40
        $region39: #{tpu_custom_call.1} parent=27 // pred_region
          %s571 = smul.u32 4, %s20
          %573 = vsyncadd %s564, 0
          %s574 = smul.addr %s571, 2
          %s575 = smul.addr %s574, 8
          %s576 = scalar_lea.hbm %s2, %s575
          %s577 = sshll.u32 %s567, 4
          %s578 = int_to_ptr.vmem [resolvable:$true] %s577
          %s579 = sshll.u32 %s576, 4
          %s580 = int_to_ptr.hbm [resolvable:$true] %s579
          %585 = dma.vmem_to_hbm [thread:$0]  %s578, 1024, %s580, %s564, 128, 128, 8
        $region40: #{tpu_custom_call.1} parent=27 // pred_fallthru
          _
      $region28: #{tpu_custom_call.1} parent=5 // pred_fallthru
        _
      %p586 = scmp.le.s32.totalorder 2, %s15
      // Predicated region
      $region41: #{tpu_custom_call.1} parent=5 // pred_check
        %p587 = pneg %p586
      $region42: #{tpu_custom_call.1} parent=5 // pred_check_branch
        %589 = sbr.rel (%p587) target = $region44
      $region43: #{tpu_custom_call.1} parent=5 // pred_region
        %s590 = ssub.s32 %s15, 2
        // Predicated region
        $region45: #{tpu_custom_call.1} parent=43 // pred_check
          %p591 = pneg %p91
        $region46: #{tpu_custom_call.1} parent=43 // pred_check_branch
          %593 = sbr.rel (%p591) target = $region48
        $region47: #{tpu_custom_call.1} parent=43 // pred_region
          %s594 = sand.u32 %s76, 1
          %s595 = scalar_lea.sflag [#allocation4], %s594
          %s596 = sand.u32 %s76, 1
          %s597 = smul.addr %s596, 64
          %s598 = scalar_lea.vmem [#allocation7], %s597
          %600 = dma.done %s595, 1024
        $region48: #{tpu_custom_call.1} parent=43 // pred_fallthru
          _
      $region44: #{tpu_custom_call.1} parent=5 // pred_fallthru
        _
    $region6: #{tpu_custom_call.1} parent=1 // loop_footer
      %s19 = sadd.s32 1, %s15
    $region7: #{tpu_custom_call.1} parent=1 // loop_footer_branch
      %14 = sbr.rel target = $region3
    $region8: #{tpu_custom_call.1} parent=1 // loop_exit
      _
    %601 = vsyncpa [#allocation3], 1
    %s602 = scalar_lea.sflag [#allocation3], 1
    %603 = vsyncpa %s602, 1
    %604 = vsyncpa [#allocation6], 1
    %s605 = scalar_lea.sflag [#allocation6], 1
    %606 = vsyncpa %s605, 1
    %607 = vsyncpa [#allocation4], 1
    %s608 = scalar_lea.sflag [#allocation4], 1
    %609 = vsyncpa %s608, 1

</llo_original>
